<compile_context>
chip_gen: v5e
topology: v5e:2x2
jax: 0.10.0
libtpu: 0.0.40
codegen_flags: <defaults>
</compile_context>

<pallas_src>
import functools

import jax
import jax.numpy as jnp
from jax.experimental import pallas as pl
from jax.experimental.pallas import tpu as pltpu


def _round_up(x, m):
    return (x + m - 1) // m * m


def _vmem_capacity_bytes():
    """Per-core VMEM capacity; conservative (v7x = 64 MiB) fallback."""
    try:
        return int(pltpu.get_tpu_info().vmem_capacity_bytes)
    except Exception:
        return 64 * 1024 * 1024


def _spec(shape, index_map, buffer_count=None):
    """BlockSpec, optionally with an explicit pipeline buffer count."""
    if buffer_count is not None:
        try:
            return pl.BlockSpec(shape, index_map,
                                pipeline_mode=pl.Buffered(buffer_count))
        except Exception:
            pass  # older jax without pipeline_mode: fall back to default
    return pl.BlockSpec(shape, index_map)


def _proj_kernel_resident(x_ref, w_ref, b_ref, o_ref):
    """Weight slab fully resident in VMEM: one fused MXU pass + bias."""
    o_ref[...] = (
        jnp.dot(x_ref[...], w_ref[...], preferred_element_type=jnp.float32)
        + b_ref[...].astype(jnp.float32)
    ).astype(o_ref.dtype)


def _proj_kernel_tiled(x_ref, w_ref, b_ref, o_ref, acc_ref):
    """General K-reduction path; accumulator seeded with the bias at k == 0."""
    k = pl.program_id(2)

    @pl.when(k == 0)
    def _():
        acc_ref[...] = jnp.broadcast_to(
            b_ref[...].astype(jnp.float32), acc_ref.shape)

    acc_ref[...] += jnp.dot(x_ref[...], w_ref[...],
                            preferred_element_type=jnp.float32)

    @pl.when(k == pl.num_programs(2) - 1)
    def _():
        o_ref[...] = acc_ref[...].astype(o_ref.dtype)


@functools.partial(jax.jit,
                   static_argnames=("tm", "tn", "tk", "force_tiled"))
def projection_forward(x, w_t, b, *, tm=None, tn=None, tk=None,
                       force_tiled=False):
    """out = x @ w_t + b, with x: (..., K), w_t: (K, N), b: (N,)."""
    orig_shape = x.shape
    K = orig_shape[-1]
    N = w_t.shape[1]
    x2d = x.reshape(-1, K)
    M = x2d.shape[0]

    x_sz = jnp.dtype(x.dtype).itemsize
    w_sz = jnp.dtype(w_t.dtype).itemsize
    o_sz = x_sz
    sub = {4: 8, 2: 16, 1: 32}.get(x_sz, 8)

    vmem_cap = _vmem_capacity_bytes()

    # Only K needs real zero padding (out-of-bounds garbage along the
    # contraction axis would corrupt every output element).  Ragged M / N use
    # partial blocks: garbage rows/cols land only in output rows/cols that the
    # masked write-back discards, so no padded copies of x / output slicing.
    K_res = _round_up(K, 128)
    N128 = _round_up(N, 128)

    # ---------------- resident-weight fast path ----------------------------
    budget = max(vmem_cap - (24 << 20), 24 << 20)

    def resident_footprint(tm_):
        return (K_res * N128 * w_sz            # weight, single-buffered
                + 2 * tm_ * K_res * x_sz       # x slab, double-buffered
                + 2 * tm_ * N128 * o_sz        # out slab, double-buffered
                + 2 * N128 * w_sz)             # bias

    tm_res = tm if tm is not None else min(512, _round_up(M, sub))
    while resident_footprint(tm_res) > budget and tm_res > sub:
        tm_res = max(sub, _round_up(tm_res // 2, sub))
    use_resident = (not force_tiled) and resident_footprint(tm_res) <= budget

    if use_resident:
        x_p = x2d if K_res == K else jnp.pad(x2d, ((0, 0), (0, K_res - K)))
        w_p = w_t if K_res == K else jnp.pad(w_t, ((0, K_res - K), (0, 0)))
        b2d = b.reshape(1, N)

        grid_m = pl.cdiv(M, tm_res)
        # Small-M (decode-like) shapes: split N over a second parallel axis so
        # both v7x TensorCores get work (harmless on single-TC v5e/v6e).
        if grid_m < 2 and N >= 256:
            tn_res = _round_up(pl.cdiv(N, 2), 128)
            grid_n = pl.cdiv(N, tn_res)
        else:
            tn_res = N              # full (possibly unaligned) dim as block
            grid_n = 1
        w_buf = 1 if grid_n == 1 else None   # grid-invariant -> single buffer

        vmem_limit = int(min(max(resident_footprint(tm_res) + (8 << 20),
                                 16 << 20), vmem_cap))
        cost = pl.CostEstimate(
            flops=2 * M * N * K, transcendentals=0,
            bytes_accessed=int(M * K_res * x_sz + grid_n * K_res * N * w_sz
                               + M * N * o_sz + N * w_sz))

        out2d = pl.pallas_call(
            _proj_kernel_resident,
            out_shape=jax.ShapeDtypeStruct((M, N), x.dtype),
            grid_spec=pltpu.PrefetchScalarGridSpec(
                num_scalar_prefetch=0,
                grid=(grid_m, grid_n),
                in_specs=[
                    _spec((tm_res, K_res), lambda i, j: (i, 0)),
                    _spec((K_res, tn_res), lambda i, j: (0, j), w_buf),
                    _spec((1, tn_res), lambda i, j: (0, j), 1),
                ],
                out_specs=pl.BlockSpec((tm_res, tn_res), lambda i, j: (i, j)),
            ),
            compiler_params=pltpu.CompilerParams(
                dimension_semantics=("parallel", "parallel"),
                vmem_limit_bytes=vmem_limit,
            ),
            cost_estimate=cost,
        )(x_p, w_p, b2d)
        return out2d.reshape(*orig_shape[:-1], N)

    # ---------------- general tiled K-reduction path -----------------------
    tm_t = tm if tm is not None else min(512, _round_up(M, sub))
    tn_t = tn if tn is not None else min(512, N128)
    if tn_t < N and tn_t % 256:
        tn_t = _round_up(tn_t, 256)   # keep the 2x256 MXUs (v6e/v7x) full
    tk_t = tk if tk is not None else min(512, K_res)
    K_tiled = _round_up(K_res, tk_t)

    x_p = x2d if K_tiled == K else jnp.pad(x2d, ((0, 0), (0, K_tiled - K)))
    w_p = w_t if K_tiled == K else jnp.pad(w_t, ((0, K_tiled - K), (0, 0)))
    b2d = b.reshape(1, N)

    grid_m = pl.cdiv(M, tm_t)
    grid_n = pl.cdiv(N, tn_t)
    grid_k = K_tiled // tk_t
    w_buf = 3 if grid_k >= 4 else None     # hide HBM jitter on the K stream

    footprint = (2 * tm_t * tk_t * x_sz + (w_buf or 2) * tk_t * tn_t * w_sz
                 + 2 * tm_t * tn_t * o_sz + 2 * tn_t * w_sz
                 + tm_t * tn_t * 4)
    vmem_limit = int(min(max(footprint + (8 << 20), 32 << 20), vmem_cap))
    cost = pl.CostEstimate(
        flops=2 * M * N * K, transcendentals=0,
        bytes_accessed=int(grid_n * M * K_tiled * x_sz
                           + grid_m * K_tiled * N * w_sz
                           + M * N * o_sz + N * w_sz))

    out2d = pl.pallas_call(
        _proj_kernel_tiled,
        out_shape=jax.ShapeDtypeStruct((M, N), x.dtype),
        grid_spec=pltpu.PrefetchScalarGridSpec(
            num_scalar_prefetch=0,
            grid=(grid_m, grid_n, grid_k),
            in_specs=[
                _spec((tm_t, tk_t), lambda i, j, k: (i, k)),
                _spec((tk_t, tn_t), lambda i, j, k: (k, j), w_buf),
                _spec((1, tn_t), lambda i, j, k: (0, j), 1),
            ],
            out_specs=pl.BlockSpec((tm_t, tn_t), lambda i, j, k: (i, j)),
            scratch_shapes=[pltpu.VMEM((tm_t, tn_t), jnp.float32)],
        ),
        compiler_params=pltpu.CompilerParams(
            dimension_semantics=("parallel", "parallel", "arbitrary"),
            vmem_limit_bytes=vmem_limit,
        ),
        cost_estimate=cost,
    )(x_p, w_p, b2d)
    return out2d.reshape(*orig_shape[:-1], N)


def _reference(x, w_t, b):
    y = jax.lax.dot_general(
        x.reshape(-1, x.shape[-1]), w_t,
        (((1,), (0,)), ((), ())),
        precision=jax.lax.Precision.HIGHEST) + b
    return y.reshape(*x.shape[:-1], w_t.shape[1])


if __name__ == "__main__":
    key = jax.random.PRNGKey(0)
    keys = jax.random.split(key, 9)

    # ---- test 1: resident-weight fast path (small, aligned) ---------------
    batch, seq, inp_dim, d_model = 2, 8, 128, 128
    weight = jax.random.normal(keys[0], (d_model, inp_dim), jnp.float32) * 0.02
    bias = jax.random.normal(keys[1], (d_model,), jnp.float32) * 0.01
    x = jax.random.normal(keys[2], (batch, seq, inp_dim), jnp.float32)
    w_tp = weight.T  # (inp_dim, d_model)

    out = jax.block_until_ready(projection_forward(x, w_tp, bias))
    ref = _reference(x, w_tp, bias)
    assert out.shape == (batch, seq, d_model)
    assert jnp.allclose(out, ref, atol=1e-3, rtol=1e-3)

    # ---- test 2: tiled K-reduction path, ragged M / N / K -----------------
    batch2, seq2, inp2, dm2 = 2, 7, 200, 300
    weight2 = jax.random.normal(keys[3], (dm2, inp2), jnp.float32) * 0.02
    bias2 = jax.random.normal(keys[4], (dm2,), jnp.float32) * 0.01
    x2 = jax.random.normal(keys[5], (batch2, seq2, inp2), jnp.float32)
    w2_tp = weight2.T

    out2 = jax.block_until_ready(
        projection_forward(x2, w2_tp, bias2, tk=128, force_tiled=True))
    ref2 = _reference(x2, w2_tp, bias2)
    assert out2.shape == (batch2, seq2, dm2)
    assert jnp.allclose(out2, ref2, atol=1e-3, rtol=1e-3)

    # ---- test 3: resident path with N split (small-M / both v7x cores) ----
    batch3, seq3, inp3, dm3 = 1, 8, 256, 512
    weight3 = jax.random.normal(keys[6], (dm3, inp3), jnp.float32) * 0.02
    bias3 = jax.random.normal(keys[7], (dm3,), jnp.float32) * 0.01
    x3 = jax.random.normal(keys[8], (batch3, seq3, inp3), jnp.float32)
    w3_tp = weight3.T

    out3 = jax.block_until_ready(projection_forward(x3, w3_tp, bias3))
    ref3 = _reference(x3, w3_tp, bias3)
    assert out3.shape == (batch3, seq3, dm3)
    assert jnp.allclose(out3, ref3, atol=1e-3, rtol=1e-3)

    print("KERNEL_OK")
</pallas_src>

<mosaic_0001>
module attributes {stable_mosaic.version = 11 : i64} {
  func.func @_proj_kernel_resident(%arg0: i32, %arg1: i32, %arg2: memref<16x128xf32, #tpu.memory_space<vmem>>, %arg3: memref<128x128xf32, #tpu.memory_space<vmem>>, %arg4: memref<1x128xf32, #tpu.memory_space<vmem>>, %arg5: memref<16x128xf32, #tpu.memory_space<vmem>>) attributes {dimension_semantics = [#tpu.dimension_semantics<parallel>, #tpu.dimension_semantics<parallel>], iteration_bounds = array<i64: 1, 1>, scalar_prefetch = 0 : i64, scratch_operands = 0 : i64, tpu.core_type = #tpu.core_type<tc>, window_params = [{transform_indices = @transform_0, window_bounds = array<i64: 16, 128>}, {pipeline_mode = #tpu.pipeline_mode<synchronous>, transform_indices = @transform_1, window_bounds = array<i64: 128, 128>}, {pipeline_mode = #tpu.pipeline_mode<synchronous>, transform_indices = @transform_2, window_bounds = array<i64: 1, 128>}, {transform_indices = @transform_3, window_bounds = array<i64: 16, 128>}]} {
    %c0 = arith.constant 0 : index
    %c0_0 = arith.constant 0 : index
    %0 = vector.load %arg2[%c0, %c0_0] : memref<16x128xf32, #tpu.memory_space<vmem>>, vector<16x128xf32>
    %c0_1 = arith.constant 0 : index
    %c0_2 = arith.constant 0 : index
    %1 = vector.load %arg3[%c0_1, %c0_2] : memref<128x128xf32, #tpu.memory_space<vmem>>, vector<128x128xf32>
    %cst = arith.constant dense<0.000000e+00> : vector<16x128xf32>
    %2 = tpu.matmul %0, %1, %cst {dimension_numbers = #tpu.dot_dimension_numbers<[1], [0], [0], [1], [0, 0, 1, 1], [], []>} : vector<16x128xf32>, vector<128x128xf32>, vector<16x128xf32> -> vector<16x128xf32>
    %c0_3 = arith.constant 0 : index
    %c0_4 = arith.constant 0 : index
    %3 = vector.load %arg4[%c0_3, %c0_4] : memref<1x128xf32, #tpu.memory_space<vmem>>, vector<1x128xf32>
    %4 = vector.broadcast %3 : vector<1x128xf32> to vector<16x128xf32>
    %5 = arith.addf %2, %4 : vector<16x128xf32>
    %c0_5 = arith.constant 0 : index
    %c0_6 = arith.constant 0 : index
    %6 = vector.load %arg5[%c0_5, %c0_6] : memref<16x128xf32, #tpu.memory_space<vmem>>, vector<16x128xf32>
    tpu.vector_store %arg5[%c0_5, %c0_6], %5 {strides = array<i32>} : memref<16x128xf32, #tpu.memory_space<vmem>>, vector<16x128xf32>,
    return
  }
  func.func @transform_0(%arg0: i32, %arg1: i32) -> (i32, i32) {
    %c0_i32 = arith.constant 0 : i32
    %c0_i32_0 = arith.constant 0 : i32
    return %arg0, %c0_i32 : i32, i32
  }
  func.func @transform_1(%arg0: i32, %arg1: i32) -> (i32, i32) {
    %c0_i32 = arith.constant 0 : i32
    %c0_i32_0 = arith.constant 0 : i32
    return %c0_i32, %arg1 : i32, i32
  }
  func.func @transform_2(%arg0: i32, %arg1: i32) -> (i32, i32) {
    %c0_i32 = arith.constant 0 : i32
    %c0_i32_0 = arith.constant 0 : i32
    return %c0_i32, %arg1 : i32, i32
  }
  func.func @transform_3(%arg0: i32, %arg1: i32) -> (i32, i32) {
    %c0_i32 = arith.constant 0 : i32
    return %arg0, %arg1 : i32, i32
  }
}

</mosaic_0001>

<llo_original>
// kernel: projection_forward.1
$region0: #{projection_forward.1}
  #allocation0 [shape = 'u32[]', space=smem, size = 0x4, offset = 0x4, fixed_abs, tag = 'smem constant byte address 0x4 - core index']
  #allocation1 [shape = 'u32[72,128]{1,0:T(1,128)}', space=vmem, size = 0x9000, scoped, tag = 'internal scratch']
  %s0 = inlined_call_operand.hbm [shape: f32[16,128], index: 0, kind: input, shape index: {}]
  %s1 = inlined_call_operand.hbm [shape: f32[128,128], index: 1, kind: input, shape index: {}]
  %s2 = inlined_call_operand.vmem [shape: f32[1,128], index: 2, kind: input, shape index: {}]
  %s3 = inlined_call_operand.hbm [shape: f32[16,128], index: 3, kind: output, shape index: {}]
  %s4 = sld [smem:[#allocation0]]
  $region30: #{projection_forward.1} parent=0
    _
  %s6 = ssub.s32 1, %s4
  %s7 = scalar_select 0, %s6, %s4
  $region1: #{projection_forward.1} parent=0
    #allocation2 [shape = 'u8[8192]{0}', space=vmem, size = 0x2000, scoped, tag = 'input window, operand 0, single buffered']
    #allocation3 [shape = 's32[1]{0}', space=sflag, size = 0x4, scoped, tag = 'scoped memory for projection_forward.1']
    #allocation4 [shape = 's32[1]{0}', space=sflag, size = 0x4, scoped, tag = 'scoped memory for projection_forward.1']
    #allocation5 [shape = 'u8[65536]{0}', space=vmem, size = 0x10000, scoped, tag = 'input window, operand 1, single buffered']
    #allocation6 [shape = 's32[1]{0}', space=sflag, size = 0x4, scoped, tag = 'scoped memory for projection_forward.1']
    #allocation7 [shape = 'u8[8192]{0}', space=vmem, size = 0x2000, scoped, tag = 'output window, operand 0, single buffered']
    %8 = vsyncpa [#allocation3], 0
    %9 = vsyncpa [#allocation6], 0
    %10 = vsyncpa [#allocation4], 0
    // Predicated region
    $region2: #{projection_forward.1} parent=1 // pred_check
      _
    $region3: #{projection_forward.1} parent=1 // pred_check_branch
      %12 = sbr.rel (0) target = $region5
    $region4: #{projection_forward.1} parent=1 // pred_region
      %14 = vsyncadd [#allocation3], 0
      %s15 = sshll.u32 %s0, 4
      %s16 = int_to_ptr.hbm [resolvable:$true] %s15
      %s17 = sshll.u32 [#allocation2], 4
      %s18 = int_to_ptr.vmem [resolvable:$true] %s17
      %23 = dma.hbm_to_vmem [thread:$0]  %s16, 256, %s18, [#allocation3], 128, 128, 8
    $region5: #{projection_forward.1} parent=1 // pred_fallthru
      _
    // Predicated region
    $region6: #{projection_forward.1} parent=1 // pred_check
      _
    $region7: #{projection_forward.1} parent=1 // pred_check_branch
      %25 = sbr.rel (0) target = $region9
    $region8: #{projection_forward.1} parent=1 // pred_region
      %27 = vsyncadd [#allocation6], 0
      %s28 = sshll.u32 %s1, 4
      %s29 = int_to_ptr.hbm [resolvable:$true] %s28
      %s30 = sshll.u32 [#allocation5], 4
      %s31 = int_to_ptr.vmem [resolvable:$true] %s30
      %36 = dma.hbm_to_vmem [thread:$0]  %s29, 2048, %s31, [#allocation6], 128, 128, 8
    $region9: #{projection_forward.1} parent=1 // pred_fallthru
      _
    // Predicated region
    $region10: #{projection_forward.1} parent=1 // pred_check
      _
    $region11: #{projection_forward.1} parent=1 // pred_check_branch
      %38 = sbr.rel (0) target = $region13
    $region12: #{projection_forward.1} parent=1 // pred_region
      _
    $region13: #{projection_forward.1} parent=1 // pred_fallthru
      _
    // Predicated region
    $region14: #{projection_forward.1} parent=1 // pred_check
      _
    $region15: #{projection_forward.1} parent=1 // pred_check_branch
      %40 = sbr.rel (0) target = $region17
    $region16: #{projection_forward.1} parent=1 // pred_region
      %42 = dma.done [#allocation3], 256
    $region17: #{projection_forward.1} parent=1 // pred_fallthru
      _
    // Predicated region
    $region18: #{projection_forward.1} parent=1 // pred_check
      _
    $region19: #{projection_forward.1} parent=1 // pred_check_branch
      %44 = sbr.rel (0) target = $region21
    $region20: #{projection_forward.1} parent=1 // pred_region
      %46 = dma.done [#allocation6], 2048
    $region21: #{projection_forward.1} parent=1 // pred_fallthru
      _
    %v47 = vld [vmem:[#allocation2] sm:$0xff]
    %v48 = vld [vmem:[#allocation2 + $0x8] sm:$0xff]
    %v49 = vld [vmem:[#allocation5] sm:$0xff]
    %v50 = vld [vmem:[#allocation5 + $0x8] sm:$0xff]
    %v51 = vld [vmem:[#allocation5 + $0x10] sm:$0xff]
    %v52 = vld [vmem:[#allocation5 + $0x18] sm:$0xff]
    %v53 = vld [vmem:[#allocation5 + $0x20] sm:$0xff]
    %v54 = vld [vmem:[#allocation5 + $0x28] sm:$0xff]
    %v55 = vld [vmem:[#allocation5 + $0x30] sm:$0xff]
    %v56 = vld [vmem:[#allocation5 + $0x38] sm:$0xff]
    %v57 = vld [vmem:[#allocation5 + $0x40] sm:$0xff]
    %v58 = vld [vmem:[#allocation5 + $0x48] sm:$0xff]
    %v59 = vld [vmem:[#allocation5 + $0x50] sm:$0xff]
    %v60 = vld [vmem:[#allocation5 + $0x58] sm:$0xff]
    %v61 = vld [vmem:[#allocation5 + $0x60] sm:$0xff]
    %v62 = vld [vmem:[#allocation5 + $0x68] sm:$0xff]
    %v63 = vld [vmem:[#allocation5 + $0x70] sm:$0xff]
    %v64 = vld [vmem:[#allocation5 + $0x78] sm:$0xff]
    %v65 = vld [vmem:[%s2] sm:$0x1]
    %v67 = vperm.slane %v65, 0
    %69 = vmatpush.msra.mxu0 %v64
    %70 = vmatpush.msra.mxu0 %v63
    %71 = vmatpush.msra.mxu0 %v62
    %72 = vmatpush.msra.mxu0 %v61
    %73 = vmatpush.msra.mxu0 %v60
    %74 = vmatpush.msra.mxu0 %v59
    %75 = vmatpush.msra.mxu0 %v58
    %76 = vmatpush.msra.mxu0 %v57
    %77 = vmatpush.msra.mxu0 %v56
    %78 = vmatpush.msra.mxu0 %v55
    %79 = vmatpush.msra.mxu0 %v54
    %80 = vmatpush.msra.mxu0 %v53
    %81 = vmatpush.msra.mxu0 %v52
    %82 = vmatpush.msra.mxu0 %v51
    %83 = vmatpush.msra.mxu0 %v50
    %84 = vmatpush.msra.mxu0 %v49
    %85 = vmatmul.f32.gmra.mxu0 %v47
    %v86 = vpop.f32.mrf.mxu0
    %v87 = vadd.f32 %v67, %v86
    %88 = vmatmul.f32.gmra.mxu0 %v48
    %v89 = vpop.f32.mrf.mxu0
    %v90 = vadd.f32 %v67, %v89
    %91 = vdwg.mxu0
    %92 = vst [vmem:[#allocation7] sm:$0xff] %v87
    %93 = vst [vmem:[#allocation7 + $0x8] sm:$0xff] %v90
    // Predicated region
    $region22: #{projection_forward.1} parent=1 // pred_check
      _
    $region23: #{projection_forward.1} parent=1 // pred_check_branch
      %95 = sbr.rel (0) target = $region25
    $region24: #{projection_forward.1} parent=1 // pred_region
      %97 = vsyncadd [#allocation4], 0
      %s98 = sshll.u32 [#allocation7], 4
      %s99 = int_to_ptr.vmem [resolvable:$true] %s98
      %s100 = sshll.u32 %s3, 4
      %s101 = int_to_ptr.hbm [resolvable:$true] %s100
      %106 = dma.vmem_to_hbm [thread:$0]  %s99, 256, %s101, [#allocation4], 128, 128, 8
    $region25: #{projection_forward.1} parent=1 // pred_fallthru
      _
    // Predicated region
    $region26: #{projection_forward.1} parent=1 // pred_check
      _
    $region27: #{projection_forward.1} parent=1 // pred_check_branch
      %108 = sbr.rel (0) target = $region29
    $region28: #{projection_forward.1} parent=1 // pred_region
      %110 = dma.done [#allocation4], 256
    $region29: #{projection_forward.1} parent=1 // pred_fallthru
      _
    %111 = vsyncpa [#allocation3], 1
    %112 = vsyncpa [#allocation6], 1
    %113 = vsyncpa [#allocation4], 1

</llo_original>
